<compile_context>
chip_gen: v5e
topology: v5e:2x2
jax: 0.10.0
libtpu: 0.0.40
codegen_flags: <defaults>
</compile_context>

<pallas_src>
import functools

import jax
import jax.numpy as jnp
from jax.experimental import pallas as pl
from jax.experimental.pallas import tpu as pltpu


def _round_up(x, m):
    return ((x + m - 1) // m) * m


def _elu(z):
    # F.elu with alpha=1; clamp the exp argument so the untaken branch is safe.
    return jnp.where(z > 0.0, z, jnp.exp(jnp.minimum(z, 0.0)) - 1.0)


def _tree_sum(xs):
    # balanced add tree (short dependency chain on the VPU)
    xs = list(xs)
    while len(xs) > 1:
        nxt = [xs[i] + xs[i + 1] for i in range(0, len(xs) - 1, 2)]
        if len(xs) % 2:
            nxt.append(xs[-1])
        xs = nxt
    return xs[0]


def tlmix_kernel(x_ref, wcat_ref, wl_ref, wout_ref, out_ref, *,
                 n_agents, embed_dim, state_dim, tail_off, bias_off):
    A, E, S = n_agents, embed_dim, state_dim
    E2 = 2 * E

    x = x_ref[...]
    s_aug = x[:, 0:S + 1]                      # [states | 1]  (offset-0 MXU operand)
    aq = x[:, S + 1:S + 1 + A]                 # agent_qs

    # Every state-conditioned layer (hypernets, hyper-biases, V first layers,
    # leader fc1) plus ALL their biases (via the ones column) in ONE lane-dense
    # MXU matmul. Columns are padded/aligned to a multiple of 128 lanes.
    h = jnp.dot(s_aug, wcat_ref[...], preferred_element_type=jnp.float32)

    # Tail lane group: [v1a | v2a | fc1 | out-bias | pad]; a single ReLU covers
    # both V first layers and the leader fc1 (bias/pad lanes have zero weights
    # downstream, so the extra relu on them is harmless).
    g = jnp.maximum(h[:, tail_off:], 0.0)

    # Leader network output l = fc2(relu(fc1(s))); fc2 bias comes from h's
    # ones-column bias lanes.
    l = (jnp.dot(g, wl_ref[...], preferred_element_type=jnp.float32)
         + h[:, bias_off + 2:bias_off + 2 + A])
    q = aq + l                                 # (TB, A)  agent_qs + l

    # Both mixers fused side-by-side on (TB, 2E) lanes: [mixer1 | mixer2].
    w12 = jnp.abs(h[:, 0:A * E2])              # |hyper_w_{1,2}(s)|, per-agent blocks
    terms = [q[:, a:a + 1] * w12[:, a * E2:(a + 1) * E2] for a in range(A)]
    hidden = _elu(h[:, A * E2:(A + 1) * E2] + _tree_sum(terms))     # + [hb1 | hb2]
    prod = hidden * jnp.abs(h[:, (A + 1) * E2:(A + 2) * E2])        # * |[hw1f|hw2f]|

    # V second layers, bmm(hidden, w_final) reductions and the leader output
    # fused into one small MXU matmul -> one packed value, one store.
    lhs = jnp.concatenate([g, prod], axis=1)
    out = (jnp.dot(lhs, wout_ref[...], preferred_element_type=jnp.float32)
           + h[:, bias_off:bias_off + A + 2])  # [+v1b_b | +v2b_b | +fc2_b]
    out_ref[...] = out.astype(out_ref.dtype)


def pack_params(params, *, n_agents, embed_dim, leader_hidden_dim, state_dim):
    A, E, LH, S = n_agents, embed_dim, leader_hidden_dim, state_dim
    E2 = 2 * E
    f32 = jnp.float32

    def wb(name):
        return params[name + "_w"].astype(f32), params[name + "_b"].astype(f32)

    hw1_w, hw1_b = wb("hw1"); hw2_w, hw2_b = wb("hw2")
    hb1_w, hb1_b = wb("hb1"); hb2_w, hb2_b = wb("hb2")
    hw1f_w, hw1f_b = wb("hw1f"); hw2f_w, hw2f_b = wb("hw2f")
    v1a_w, v1a_b = wb("v1a"); v2a_w, v2a_b = wb("v2a")
    v1b_w, v1b_b = wb("v1b"); v2b_w, v2b_b = wb("v2b")
    fc1_w, fc1_b = wb("fc1"); fc2_w, fc2_b = wb("fc2")

    # Hypernet weights interleaved per agent: [hw1_a | hw2_a] * A  (both mixers
    # share the same 2E-lane groups downstream).
    hw_w = jnp.concatenate(
        [jnp.concatenate([hw1_w[:, a * E:(a + 1) * E],
                          hw2_w[:, a * E:(a + 1) * E]], axis=1) for a in range(A)],
        axis=1)
    hw_b = jnp.concatenate(
        [jnp.concatenate([hw1_b[:, a * E:(a + 1) * E],
                          hw2_b[:, a * E:(a + 1) * E]], axis=1) for a in range(A)],
        axis=1)

    head_w = jnp.concatenate([hw_w,
                              jnp.concatenate([hb1_w, hb2_w], axis=1),
                              jnp.concatenate([hw1f_w, hw2f_w], axis=1)], axis=1)
    head_b = jnp.concatenate([hw_b,
                              jnp.concatenate([hb1_b, hb2_b], axis=1),
                              jnp.concatenate([hw1f_b, hw2f_b], axis=1)], axis=1)
    head_n = head_w.shape[1]                       # (A + 2) * 2E
    tail_off = _round_up(head_n, 128)

    out_bias = jnp.concatenate([v1b_b.reshape(1, 1), v2b_b.reshape(1, 1),
                                fc2_b.reshape(1, A)], axis=1)     # (1, A+2)

    tail_w = jnp.concatenate([jnp.concatenate([v1a_w, v2a_w], axis=1),
                              fc1_w,
                              jnp.zeros((S, A + 2), f32)], axis=1)
    tail_b = jnp.concatenate([jnp.concatenate([v1a_b, v2a_b], axis=1),
                              fc1_b,
                              out_bias], axis=1)
    tail_n = _round_up(tail_w.shape[1], 128)
    n_cat = tail_off + tail_n
    bias_off = tail_off + E2 + LH

    def padcols(x, width):
        return jnp.pad(x, ((0, 0), (0, width - x.shape[1])))

    w_full = jnp.concatenate([padcols(head_w, tail_off), padcols(tail_w, tail_n)], axis=1)
    b_full = jnp.concatenate([padcols(head_b, tail_off), padcols(tail_b, tail_n)], axis=1)
    w_cat = jnp.concatenate([w_full, b_full], axis=0)             # (S+1, n_cat)

    # Output matmul: rows = [tail lanes | mixer-product lanes], cols = [y1, y2, l...]
    w_out = jnp.zeros((tail_n + E2, A + 2), f32)
    w_out = w_out.at[0:E, 0].set(v1b_w[:, 0])                     # V1 second layer
    w_out = w_out.at[E:E2, 1].set(v2b_w[:, 0])                    # V2 second layer
    w_out = w_out.at[E2:E2 + LH, 2:].set(fc2_w)                   # leader fc2
    w_out = w_out.at[tail_n:tail_n + E, 0].set(1.0)               # sum(hidden1*wf1)
    w_out = w_out.at[tail_n + E:tail_n + E2, 1].set(1.0)          # sum(hidden2*wf2)

    w_l = w_out[:tail_n, 2:]                                      # (tail_n, A): fc2 only

    meta = dict(tail_off=int(tail_off), bias_off=int(bias_off),
                n_cat=int(n_cat), tail_n=int(tail_n))
    return w_cat, w_l, w_out, meta


def tlmix_forward(agent_qs, states, params, *, embed_dim, tile_b=1024):
    bs, T, A = agent_qs.shape
    S = states.shape[-1]
    B = bs * T
    LH = params["fc1_w"].shape[1]
    E = embed_dim

    aq = agent_qs.reshape(B, A).astype(jnp.float32)
    st = states.reshape(B, S).astype(jnp.float32)
    ones = jnp.ones((B, 1), jnp.float32)
    xin = jnp.concatenate([st, ones, aq], axis=1)        # one streamed slab (B, S+1+A)
    XW = S + 1 + A

    # tile selection: big tiles for big B, >=2 grid steps when possible (v7x
    # has 2 TensorCores), cap so per-tile intermediates stay well under VMEM.
    b8 = _round_up(B, 8)
    tile_b = int(max(8, min(_round_up(int(tile_b), 8), 4096, b8)))
    if tile_b >= b8 and b8 >= 16:
        tile_b = _round_up((b8 + 1) // 2, 8)
    B_pad = _round_up(B, tile_b)
    if B_pad != B:
        xin = jnp.pad(xin, ((0, B_pad - B), (0, 0)))

    w_cat, w_l, w_out, meta = pack_params(
        params, n_agents=A, embed_dim=E, leader_hidden_dim=LH, state_dim=S)
    n_cat, tail_n = meta["n_cat"], meta["tail_n"]

    grid = (B_pad // tile_b,)
    in_specs = [
        pl.BlockSpec((tile_b, XW), lambda i: (i, 0)),     # [states | 1 | agent_qs] rows
        pl.BlockSpec(w_cat.shape, lambda i: (0, 0)),      # fused projection weights
        pl.BlockSpec(w_l.shape, lambda i: (0, 0)),        # leader fc2 (tail-padded)
        pl.BlockSpec(w_out.shape, lambda i: (0, 0)),      # fused output matmul weights
    ]
    out_specs = pl.BlockSpec((tile_b, A + 2), lambda i: (i, 0))
    out_shape = jax.ShapeDtypeStruct((B_pad, A + 2), jnp.float32)

    k1 = (S + 1) * n_cat
    k2 = tail_n * A
    k3 = (tail_n + 2 * E) * (A + 2)
    cost = pl.CostEstimate(
        flops=2 * B_pad * (k1 + k2 + k3) + 24 * B_pad * 2 * E,
        transcendentals=2 * E * B_pad,
        bytes_accessed=4 * (B_pad * (XW + A + 2) + k1 + k2 + k3))

    kernel = functools.partial(
        tlmix_kernel, n_agents=A, embed_dim=E, state_dim=S,
        tail_off=meta["tail_off"], bias_off=meta["bias_off"])
    out = pl.pallas_call(
        kernel,
        grid=grid,
        in_specs=in_specs,
        out_specs=out_specs,
        out_shape=out_shape,
        compiler_params=pltpu.CompilerParams(
            dimension_semantics=("parallel",),
            vmem_limit_bytes=32 * 1024 * 1024),
        cost_estimate=cost,
    )(xin, w_cat, w_l, w_out)

    out = out[:B]
    q_tot = out[:, 0:1].reshape(bs, T, 1)
    q2_tot = out[:, 1:2].reshape(bs, T, 1)
    l = out[:, 2:].reshape(bs, T, A)
    return q_tot, q2_tot, l


def tlmix_reference(agent_qs, states, params, *, embed_dim):
    # Pure-JAX reference mirroring the PyTorch forward (hypernet_layers == 1).
    bs, T, A = agent_qs.shape
    S = states.shape[-1]
    s = states.reshape(-1, S).astype(jnp.float32)
    p = params

    def lin(x, w, b):
        return x @ w + b

    x = jnp.maximum(lin(s, p["fc1_w"], p["fc1_b"]), 0.0)
    l = lin(x, p["fc2_w"], p["fc2_b"])
    q = agent_qs.reshape(-1, A).astype(jnp.float32) + l

    def mixer(pref):
        w1 = jnp.abs(lin(s, p[f"hw{pref}_w"], p[f"hw{pref}_b"])).reshape(-1, A, embed_dim)
        b1 = lin(s, p[f"hb{pref}_w"], p[f"hb{pref}_b"])[:, None, :]
        hidden_pre = jnp.einsum("ba,bae->be", q, w1)[:, None, :] + b1
        hidden = jnp.where(hidden_pre > 0, hidden_pre,
                           jnp.exp(jnp.minimum(hidden_pre, 0.0)) - 1.0)
        wf = jnp.abs(lin(s, p[f"hw{pref}f_w"], p[f"hw{pref}f_b"]))[:, :, None]
        vh = jnp.maximum(lin(s, p[f"v{pref}a_w"], p[f"v{pref}a_b"]), 0.0)
        v = lin(vh, p[f"v{pref}b_w"], p[f"v{pref}b_b"])[:, :, None]
        y = jnp.einsum("bqe,bei->bqi", hidden, wf) + v
        return y.reshape(bs, -1, 1)

    return mixer("1"), mixer("2"), l.reshape(bs, T, A)


def init_params(key, state_dim, n_agents, embed_dim, leader_hidden_dim):
    # Deterministic init mimicking torch.nn.Linear (uniform +/- 1/sqrt(fan_in)).
    def linear_init(k, fan_in, fan_out):
        kw, kb = jax.random.split(k)
        bound = 1.0 / float(fan_in) ** 0.5
        w = jax.random.uniform(kw, (fan_in, fan_out), jnp.float32, -bound, bound)
        b = jax.random.uniform(kb, (1, fan_out), jnp.float32, -bound, bound)
        return w, b

    shapes = {
        "fc1": (state_dim, leader_hidden_dim),
        "fc2": (leader_hidden_dim, n_agents),
        "hw1": (state_dim, embed_dim * n_agents),
        "hb1": (state_dim, embed_dim),
        "hw1f": (state_dim, embed_dim),
        "v1a": (state_dim, embed_dim),
        "v1b": (embed_dim, 1),
        "hw2": (state_dim, embed_dim * n_agents),
        "hb2": (state_dim, embed_dim),
        "hw2f": (state_dim, embed_dim),
        "v2a": (state_dim, embed_dim),
        "v2b": (embed_dim, 1),
    }
    params = {}
    keys = jax.random.split(key, len(shapes))
    for k, (name, (fi, fo)) in zip(keys, shapes.items()):
        w, b = linear_init(k, fi, fo)
        params[f"{name}_w"] = w
        params[f"{name}_b"] = b
    return params


if __name__ == "__main__":
    # args: n_agents=4, state_dim=32, mixing_embed_dim=32,
    # leader_hidden_dim=32, hypernet_layers=1
    bs, T = 2, 8
    n_agents, state_dim, embed_dim, leader_hidden_dim = 4, 32, 32, 32

    key = jax.random.PRNGKey(0)
    kp, ka, ks = jax.random.split(key, 3)
    params = init_params(kp, state_dim, n_agents, embed_dim, leader_hidden_dim)
    agent_qs = jax.random.normal(ka, (bs, T, n_agents), jnp.float32)
    states = jax.random.normal(ks, (bs, T, state_dim), jnp.float32)

    q_tot, q2_tot, l = tlmix_forward(agent_qs, states, params, embed_dim=embed_dim)
    jax.block_until_ready((q_tot, q2_tot, l))

    q_tot_ref, q2_tot_ref, l_ref = tlmix_reference(agent_qs, states, params, embed_dim=embed_dim)
    assert q_tot.shape == (bs, T, 1) and q2_tot.shape == (bs, T, 1) and l.shape == (bs, T, n_agents)
    assert jnp.allclose(q_tot, q_tot_ref, atol=1e-4, rtol=1e-4)
    assert jnp.allclose(q2_tot, q2_tot_ref, atol=1e-4, rtol=1e-4)
    assert jnp.allclose(l, l_ref, atol=1e-4, rtol=1e-4)

    # second, ragged config (B = 150 not a multiple of tile_b) to exercise the
    # padding path and a >2-step grid.
    bs2, T2 = 3, 50
    ka2, ks2 = jax.random.split(ka)
    aq2 = jax.random.normal(ka2, (bs2, T2, n_agents), jnp.float32)
    st2 = jax.random.normal(ks2, (bs2, T2, state_dim), jnp.float32)
    out2 = tlmix_forward(aq2, st2, params, embed_dim=embed_dim, tile_b=64)
    jax.block_until_ready(out2)
    ref2 = tlmix_reference(aq2, st2, params, embed_dim=embed_dim)
    for got, want in zip(out2, ref2):
        assert got.shape == want.shape
        assert jnp.allclose(got, want, atol=1e-4, rtol=1e-4)

    # third: same ragged config with the default (large) tile to exercise the
    # automatic tile clamp + 2-way split path.
    out3 = tlmix_forward(aq2, st2, params, embed_dim=embed_dim)
    jax.block_until_ready(out3)
    for got, want in zip(out3, ref2):
        assert jnp.allclose(got, want, atol=1e-4, rtol=1e-4)

    print("KERNEL_OK")
</pallas_src>

<mosaic_0001>
module attributes {stable_mosaic.version = 11 : i64} {
  func.func @tlmix_kernel(%arg0: i32, %arg1: memref<8x37xf32, #tpu.memory_space<vmem>>, %arg2: memref<33x512xf32, #tpu.memory_space<vmem>>, %arg3: memref<128x4xf32, #tpu.memory_space<vmem>>, %arg4: memref<192x6xf32, #tpu.memory_space<vmem>>, %arg5: memref<8x6xf32, #tpu.memory_space<vmem>>) attributes {dimension_semantics = [#tpu.dimension_semantics<parallel>], iteration_bounds = array<i64: 2>, scalar_prefetch = 0 : i64, scratch_operands = 0 : i64, tpu.core_type = #tpu.core_type<tc>, window_params = [{transform_indices = @transform_0, window_bounds = array<i64: 8, 37>}, {pipeline_mode = #tpu.pipeline_mode<synchronous>, transform_indices = @transform_1, window_bounds = array<i64: 33, 512>}, {pipeline_mode = #tpu.pipeline_mode<synchronous>, transform_indices = @transform_2, window_bounds = array<i64: 128, 4>}, {pipeline_mode = #tpu.pipeline_mode<synchronous>, transform_indices = @transform_3, window_bounds = array<i64: 192, 6>}, {transform_indices = @transform_4, window_bounds = array<i64: 8, 6>}]} {
    %c0 = arith.constant 0 : index
    %c0_0 = arith.constant 0 : index
    %0 = vector.load %arg1[%c0, %c0_0] : memref<8x37xf32, #tpu.memory_space<vmem>>, vector<8x37xf32>
    %1 = vector.extract_strided_slice %0 {offsets = [0, 0], sizes = [8, 33], strides = [1, 1]} : vector<8x37xf32> to vector<8x33xf32>
    %2 = vector.extract_strided_slice %0 {offsets = [0, 33], sizes = [8, 4], strides = [1, 1]} : vector<8x37xf32> to vector<8x4xf32>
    %c0_1 = arith.constant 0 : index
    %c0_2 = arith.constant 0 : index
    %3 = vector.load %arg2[%c0_1, %c0_2] : memref<33x512xf32, #tpu.memory_space<vmem>>, vector<33x512xf32>
    %cst = arith.constant dense<0.000000e+00> : vector<8x512xf32>
    %4 = tpu.matmul %1, %3, %cst {dimension_numbers = #tpu.dot_dimension_numbers<[1], [0], [0], [1], [0, 0, 1, 1], [], []>} : vector<8x33xf32>, vector<33x512xf32>, vector<8x512xf32> -> vector<8x512xf32>
    %5 = vector.extract_strided_slice %4 {offsets = [0, 384], sizes = [8, 128], strides = [1, 1]} : vector<8x512xf32> to vector<8x128xf32>
    %cst_3 = arith.constant 0.000000e+00 : f32
    %6 = vector.broadcast %cst_3 : f32 to vector<8x128xf32>
    %7 = arith.maximumf %5, %6 : vector<8x128xf32>
    %c0_4 = arith.constant 0 : index
    %c0_5 = arith.constant 0 : index
    %8 = vector.load %arg3[%c0_4, %c0_5] : memref<128x4xf32, #tpu.memory_space<vmem>>, vector<128x4xf32>
    %cst_6 = arith.constant dense<0.000000e+00> : vector<8x4xf32>
    %9 = tpu.matmul %7, %8, %cst_6 {dimension_numbers = #tpu.dot_dimension_numbers<[1], [0], [0], [1], [0, 0, 1, 1], [], []>} : vector<8x128xf32>, vector<128x4xf32>, vector<8x4xf32> -> vector<8x4xf32>
    %10 = vector.extract_strided_slice %4 {offsets = [0, 482], sizes = [8, 4], strides = [1, 1]} : vector<8x512xf32> to vector<8x4xf32>
    %11 = arith.addf %9, %10 : vector<8x4xf32>
    %12 = arith.addf %2, %11 : vector<8x4xf32>
    %13 = vector.extract_strided_slice %4 {offsets = [0, 0], sizes = [8, 256], strides = [1, 1]} : vector<8x512xf32> to vector<8x256xf32>
    %14 = math.absf %13 : vector<8x256xf32>
    %15 = vector.extract_strided_slice %12 {offsets = [0, 0], sizes = [8, 1], strides = [1, 1]} : vector<8x4xf32> to vector<8x1xf32>
    %16 = vector.extract_strided_slice %14 {offsets = [0, 0], sizes = [8, 64], strides = [1, 1]} : vector<8x256xf32> to vector<8x64xf32>
    %17 = vector.broadcast %15 : vector<8x1xf32> to vector<8x64xf32>
    %18 = arith.mulf %17, %16 : vector<8x64xf32>
    %19 = vector.extract_strided_slice %12 {offsets = [0, 1], sizes = [8, 1], strides = [1, 1]} : vector<8x4xf32> to vector<8x1xf32>
    %20 = vector.extract_strided_slice %14 {offsets = [0, 64], sizes = [8, 64], strides = [1, 1]} : vector<8x256xf32> to vector<8x64xf32>
    %21 = vector.broadcast %19 : vector<8x1xf32> to vector<8x64xf32>
    %22 = arith.mulf %21, %20 : vector<8x64xf32>
    %23 = vector.extract_strided_slice %12 {offsets = [0, 2], sizes = [8, 1], strides = [1, 1]} : vector<8x4xf32> to vector<8x1xf32>
    %24 = vector.extract_strided_slice %14 {offsets = [0, 128], sizes = [8, 64], strides = [1, 1]} : vector<8x256xf32> to vector<8x64xf32>
    %25 = vector.broadcast %23 : vector<8x1xf32> to vector<8x64xf32>
    %26 = arith.mulf %25, %24 : vector<8x64xf32>
    %27 = vector.extract_strided_slice %12 {offsets = [0, 3], sizes = [8, 1], strides = [1, 1]} : vector<8x4xf32> to vector<8x1xf32>
    %28 = vector.extract_strided_slice %14 {offsets = [0, 192], sizes = [8, 64], strides = [1, 1]} : vector<8x256xf32> to vector<8x64xf32>
    %29 = vector.broadcast %27 : vector<8x1xf32> to vector<8x64xf32>
    %30 = arith.mulf %29, %28 : vector<8x64xf32>
    %31 = vector.extract_strided_slice %4 {offsets = [0, 256], sizes = [8, 64], strides = [1, 1]} : vector<8x512xf32> to vector<8x64xf32>
    %32 = arith.addf %18, %22 : vector<8x64xf32>
    %33 = arith.addf %26, %30 : vector<8x64xf32>
    %34 = arith.addf %32, %33 : vector<8x64xf32>
    %35 = arith.addf %31, %34 : vector<8x64xf32>
    %cst_7 = arith.constant 0.000000e+00 : f32
    %36 = vector.broadcast %cst_7 : f32 to vector<8x64xf32>
    %37 = arith.cmpf ogt, %35, %36 : vector<8x64xf32>
    %cst_8 = arith.constant 0.000000e+00 : f32
    %38 = vector.broadcast %cst_8 : f32 to vector<8x64xf32>
    %39 = arith.minimumf %35, %38 : vector<8x64xf32>
    %40 = math.exp %39 : vector<8x64xf32>
    %cst_9 = arith.constant 1.000000e+00 : f32
    %41 = vector.broadcast %cst_9 : f32 to vector<8x64xf32>
    %42 = arith.subf %40, %41 : vector<8x64xf32>
    %43 = arith.select %37, %35, %42 : vector<8x64xi1>, vector<8x64xf32>
    %44 = vector.extract_strided_slice %4 {offsets = [0, 320], sizes = [8, 64], strides = [1, 1]} : vector<8x512xf32> to vector<8x64xf32>
    %45 = math.absf %44 : vector<8x64xf32>
    %46 = arith.mulf %43, %45 : vector<8x64xf32>
    %47 = tpu.concatenate %7, %46 in 1 : vector<8x128xf32>, vector<8x64xf32> -> vector<8x192xf32>
    %c0_10 = arith.constant 0 : index
    %c0_11 = arith.constant 0 : index
    %48 = vector.load %arg4[%c0_10, %c0_11] : memref<192x6xf32, #tpu.memory_space<vmem>>, vector<192x6xf32>
    %cst_12 = arith.constant dense<0.000000e+00> : vector<8x6xf32>
    %49 = tpu.matmul %47, %48, %cst_12 {dimension_numbers = #tpu.dot_dimension_numbers<[1], [0], [0], [1], [0, 0, 1, 1], [], []>} : vector<8x192xf32>, vector<192x6xf32>, vector<8x6xf32> -> vector<8x6xf32>
    %50 = vector.extract_strided_slice %4 {offsets = [0, 480], sizes = [8, 6], strides = [1, 1]} : vector<8x512xf32> to vector<8x6xf32>
    %51 = arith.addf %49, %50 : vector<8x6xf32>
    %c0_13 = arith.constant 0 : index
    %c0_14 = arith.constant 0 : index
    %52 = vector.load %arg5[%c0_13, %c0_14] : memref<8x6xf32, #tpu.memory_space<vmem>>, vector<8x6xf32>
    tpu.vector_store %arg5[%c0_13, %c0_14], %51 {strides = array<i32>} : memref<8x6xf32, #tpu.memory_space<vmem>>, vector<8x6xf32>,
    return
  }
  func.func @transform_0(%arg0: i32) -> (i32, i32) {
    %c0_i32 = arith.constant 0 : i32
    %c0_i32_0 = arith.constant 0 : i32
    return %arg0, %c0_i32 : i32, i32
  }
  func.func @transform_1(%arg0: i32) -> (i32, i32) {
    %c0_i32 = arith.constant 0 : i32
    %c0_i32_0 = arith.constant 0 : i32
    %c0_i32_1 = arith.constant 0 : i32
    return %c0_i32, %c0_i32_0 : i32, i32
  }
  func.func @transform_2(%arg0: i32) -> (i32, i32) {
    %c0_i32 = arith.constant 0 : i32
    %c0_i32_0 = arith.constant 0 : i32
    %c0_i32_1 = arith.constant 0 : i32
    return %c0_i32, %c0_i32_0 : i32, i32
  }
  func.func @transform_3(%arg0: i32) -> (i32, i32) {
    %c0_i32 = arith.constant 0 : i32
    %c0_i32_0 = arith.constant 0 : i32
    %c0_i32_1 = arith.constant 0 : i32
    return %c0_i32, %c0_i32_0 : i32, i32
  }
  func.func @transform_4(%arg0: i32) -> (i32, i32) {
    %c0_i32 = arith.constant 0 : i32
    %c0_i32_0 = arith.constant 0 : i32
    return %arg0, %c0_i32 : i32, i32
  }
}

</mosaic_0001>

<llo_original>
// kernel: tpu_custom_call.1
$region0: #{tpu_custom_call.1}
  #allocation0 [shape = 'u32[]', space=smem, size = 0x4, offset = 0x4, fixed_abs, tag = 'smem constant byte address 0x4 - core index']
  #allocation1 [shape = 'u32[72,128]{1,0:T(1,128)}', space=vmem, size = 0x9000, scoped, tag = 'internal scratch']
  %s0 = inlined_call_operand.vmem [shape: f32[16,37], index: 0, kind: input, shape index: {}]
  %s1 = inlined_call_operand.vmem [shape: f32[33,512], index: 1, kind: input, shape index: {}]
  %s2 = inlined_call_operand.vmem [shape: f32[128,4], index: 2, kind: input, shape index: {}]
  %s3 = inlined_call_operand.vmem [shape: f32[192,6], index: 3, kind: input, shape index: {}]
  %s4 = inlined_call_operand.vmem [shape: f32[16,6], index: 4, kind: output, shape index: {}]
  %s5 = sld [smem:[#allocation0]]
  $region49: #{tpu_custom_call.1} parent=0
    _
  %s7 = ssub.s32 1, %s5
  %s8 = scalar_select 0, %s7, %s5
  loop: start=0, step=1, limit=4
  $region2: #{tpu_custom_call.1} parent=0 // loop_pre_header
    _
  $region3: #{tpu_custom_call.1} parent=0 // loop_header
    %s10 = sphi 0, %s14
    %p11 = scmp.ge.s32.totalorder %s10, 4
    %s20 = sphi 0, %s22
    %s23 = sphi 0, %s20
    %s24 = sphi 0, %s23
    %s40 = sphi 0, %s24
    %s44 = sphi 0, %s44
    %s46 = sphi 0, %s44
    %s47 = sphi 0, %s46
    %s61 = sphi 0, %s47
    %s65 = sphi 0, %s65
    %s67 = sphi 0, %s65
    %s68 = sphi 0, %s67
    %s82 = sphi 0, %s68
    %s86 = sphi 0, %s86
    %s88 = sphi 0, %s86
    %s89 = sphi 0, %s88
    %s103 = sphi 0, %s89
    %s109 = sphi 0, %s111
    %s112 = sphi 0, %s109
    %s113 = sphi 0, %s112
    %s129 = sphi 0, %s113
  $region4: #{tpu_custom_call.1} parent=0 // loop_header_branch
    %13 = sbr.rel (%p11) target = $region8
  $region5: #{tpu_custom_call.1} parent=0 // loop_body
    %s15 = ssub.s32 %s10, 1
    %s16 = ssub.s32 %s10, 2
    %s17 = sadd.s32 %s10, 1
    %s18 = ssub.s32 %s10, %s17
    %p19 = scmp.eq.s32.totalorder %s18, 0
    %s21 = sadd.s32 %s20, 1
    %s22 = scalar_select %p19, %s20, %s21
    %p25 = pneg %p19
    %p26 = scmp.eq.s32.totalorder %s10, 1
    %p27 = por %p25, %p26
    %p28 = scmp.ne.s32.totalorder %s20, %s23
    %p29 = scmp.eq.s32.totalorder %s10, 0
    %p30 = por %p28, %p29
    %p31 = scmp.ne.s32.totalorder %s20, %s23
    %p32 = scmp.eq.s32.totalorder %s15, 1
    %p33 = por %p31, %p32
    %p34 = scmp.ne.s32.totalorder %s23, %s24
    %p35 = scmp.eq.s32.totalorder %s15, 0
    %p36 = por %p34, %p35
    %p37 = scmp.ne.s32.totalorder %s23, %s24
    %p38 = scmp.eq.s32.totalorder %s16, 1
    %p39 = por %p37, %p38
    %p41 = scmp.ne.s32.totalorder %s24, %s40
    %p42 = scmp.eq.s32.totalorder %s16, 0
    %p43 = por %p41, %p42
    %s45 = sadd.s32 %s44, 1
    %p48 = scmp.eq.s32.totalorder %s10, 1
    %p49 = scmp.ne.s32.totalorder %s44, %s46
    %p50 = scmp.eq.s32.totalorder %s10, 0
    %p51 = por %p49, %p50
    %p52 = scmp.ne.s32.totalorder %s44, %s46
    %p53 = scmp.eq.s32.totalorder %s15, 1
    %p54 = por %p52, %p53
    %p55 = scmp.ne.s32.totalorder %s46, %s47
    %p56 = scmp.eq.s32.totalorder %s15, 0
    %p57 = por %p55, %p56
    %p58 = scmp.ne.s32.totalorder %s46, %s47
    %p59 = scmp.eq.s32.totalorder %s16, 1
    %p60 = por %p58, %p59
    %p62 = scmp.ne.s32.totalorder %s47, %s61
    %p63 = scmp.eq.s32.totalorder %s16, 0
    %p64 = por %p62, %p63
    %s66 = sadd.s32 %s65, 1
    %p69 = scmp.eq.s32.totalorder %s10, 1
    %p70 = scmp.ne.s32.totalorder %s65, %s67
    %p71 = scmp.eq.s32.totalorder %s10, 0
    %p72 = por %p70, %p71
    %p73 = scmp.ne.s32.totalorder %s65, %s67
    %p74 = scmp.eq.s32.totalorder %s15, 1
    %p75 = por %p73, %p74
    %p76 = scmp.ne.s32.totalorder %s67, %s68
    %p77 = scmp.eq.s32.totalorder %s15, 0
    %p78 = por %p76, %p77
    %p79 = scmp.ne.s32.totalorder %s67, %s68
    %p80 = scmp.eq.s32.totalorder %s16, 1
    %p81 = por %p79, %p80
    %p83 = scmp.ne.s32.totalorder %s68, %s82
    %p84 = scmp.eq.s32.totalorder %s16, 0
    %p85 = por %p83, %p84
    %s87 = sadd.s32 %s86, 1
    %p90 = scmp.eq.s32.totalorder %s10, 1
    %p91 = scmp.ne.s32.totalorder %s86, %s88
    %p92 = scmp.eq.s32.totalorder %s10, 0
    %p93 = por %p91, %p92
    %p94 = scmp.ne.s32.totalorder %s86, %s88
    %p95 = scmp.eq.s32.totalorder %s15, 1
    %p96 = por %p94, %p95
    %p97 = scmp.ne.s32.totalorder %s88, %s89
    %p98 = scmp.eq.s32.totalorder %s15, 0
    %p99 = por %p97, %p98
    %p100 = scmp.ne.s32.totalorder %s88, %s89
    %p101 = scmp.eq.s32.totalorder %s16, 1
    %p102 = por %p100, %p101
    %p104 = scmp.ne.s32.totalorder %s89, %s103
    %p105 = scmp.eq.s32.totalorder %s16, 0
    %p106 = por %p104, %p105
    %s107 = ssub.s32 %s10, %s17
    %p108 = scmp.eq.s32.totalorder %s107, 0
    %s110 = sadd.s32 %s109, 1
    %s111 = scalar_select %p108, %s109, %s110
    %p114 = pneg %p108
    %p115 = scmp.eq.s32.totalorder %s10, 1
    %p116 = por %p114, %p115
    %p117 = scmp.ne.s32.totalorder %s109, %s112
    %p118 = scmp.eq.s32.totalorder %s10, 0
    %p119 = por %p117, %p118
    %p120 = scmp.ne.s32.totalorder %s109, %s112
    %p121 = scmp.eq.s32.totalorder %s15, 1
    %p122 = por %p120, %p121
    %p123 = scmp.ne.s32.totalorder %s112, %s113
    %p124 = scmp.eq.s32.totalorder %s15, 0
    %p125 = por %p123, %p124
    %p126 = scmp.ne.s32.totalorder %s112, %s113
    %p127 = scmp.eq.s32.totalorder %s16, 1
    %p128 = por %p126, %p127
    %p130 = scmp.ne.s32.totalorder %s113, %s129
    %p131 = scmp.eq.s32.totalorder %s16, 0
    %p132 = por %p130, %p131
    %p133 = scmp.le.s32.totalorder 1, %s10
    %p134 = scmp.lt.s32.totalorder %s10, 3
    %p135 = pnand %p133, %p134
    %p136 = pneg %p135
    // Predicated region
    $region9: #{tpu_custom_call.1} parent=5 // pred_check
      _
    $region10: #{tpu_custom_call.1} parent=5 // pred_check_branch
      %138 = sbr.rel (%p135) target = $region12
    $region11: #{tpu_custom_call.1} parent=5 // pred_region
      %s139 = ssub.s32 %s10, 1
      // Predicated region
      $region13: #{tpu_custom_call.1} parent=11 // pred_check
        %p140 = pneg %p57
      $region14: #{tpu_custom_call.1} parent=11 // pred_check_branch
        %142 = sbr.rel (%p140) target = $region16
      $region15: #{tpu_custom_call.1} parent=11 // pred_region
        _
      $region16: #{tpu_custom_call.1} parent=11 // pred_fallthru
        _
      // Predicated region
      $region17: #{tpu_custom_call.1} parent=11 // pred_check
        %p143 = pneg %p78
      $region18: #{tpu_custom_call.1} parent=11 // pred_check_branch
        %145 = sbr.rel (%p143) target = $region20
      $region19: #{tpu_custom_call.1} parent=11 // pred_region
        _
      $region20: #{tpu_custom_call.1} parent=11 // pred_fallthru
        _
      // Predicated region
      $region21: #{tpu_custom_call.1} parent=11 // pred_check
        %p146 = pneg %p99
      $region22: #{tpu_custom_call.1} parent=11 // pred_check_branch
        %148 = sbr.rel (%p146) target = $region24
      $region23: #{tpu_custom_call.1} parent=11 // pred_region
        _
      $region24: #{tpu_custom_call.1} parent=11 // pred_fallthru
        _
    $region12: #{tpu_custom_call.1} parent=5 // pred_fallthru
      _
    %p149 = scmp.lt.s32.totalorder %s10, 2
    // Predicated region
    $region25: #{tpu_custom_call.1} parent=5 // pred_check
      %p150 = pneg %p149
    $region26: #{tpu_custom_call.1} parent=5 // pred_check_branch
      %152 = sbr.rel (%p150) target = $region28
    $region27: #{tpu_custom_call.1} parent=5 // pred_region
      // Predicated region
      $region29: #{tpu_custom_call.1} parent=27 // pred_check
        %p153 = pneg %p30
      $region30: #{tpu_custom_call.1} parent=27 // pred_check_branch
        %155 = sbr.rel (%p153) target = $region32
      $region31: #{tpu_custom_call.1} parent=27 // pred_region
        %p156 = scmp.lt.s32.totalorder %s10, 1
        %s157 = scalar_select %p156, %s10, 1
        %s158 = smul.addr %s157, 8
        %s159 = scalar_lea.vmem %s0, %s158
      $region32: #{tpu_custom_call.1} parent=27 // pred_fallthru
        _
    $region28: #{tpu_custom_call.1} parent=5 // pred_fallthru
      _
    %p160 = scmp.le.s32.totalorder 1, %s10
    %p161 = scmp.lt.s32.totalorder %s10, 3
    %p162 = pnand %p160, %p161
    %p163 = pneg %p162
    // Predicated region
    $region33: #{tpu_custom_call.1} parent=5 // pred_check
      _
    $region34: #{tpu_custom_call.1} parent=5 // pred_check_branch
      %165 = sbr.rel (%p162) target = $region36
    $region35: #{tpu_custom_call.1} parent=5 // pred_region
      %s166 = ssub.s32 %s10, 1
      %p167 = scmp.lt.s32.totalorder %s15, 1
      %s168 = scalar_select %p167, %s15, 1
      %s169 = smul.addr %s168, 8
      %s170 = scalar_lea.vmem %s0, %s169
      %p171 = pneg %p36
      %p172 = pneg %p33
      %p173 = pneg %p57
      %p174 = pneg %p54
      %p175 = pneg %p78
      %p176 = pneg %p75
      %p177 = pneg %p99
      %p178 = pneg %p96
      %p179 = pneg %p125
      %p180 = pneg %p122
      %p181 = scmp.lt.s32.totalorder %s15, 1
      %s182 = scalar_select %p181, %s15, 1
      %s183 = smul.addr %s182, 8
      %s184 = scalar_lea.vmem %s4, %s183
      %p185 = scmp.lt.s32.totalorder %s15, 1
      %s186 = scalar_select %p185, %s15, 1
      %s187 = smul.addr %s186, 8
      %s188 = scalar_lea.vmem %s0, %s187
      %p189 = scmp.lt.s32.totalorder %s15, 1
      %s190 = scalar_select %p189, %s15, 1
      %s191 = smul.addr %s190, 8
      %s192 = scalar_lea.vmem %s4, %s191
      %v193 = vld [vmem:[%s188] sm:$0xff]
      %v194 = vld [vmem:[%s1] sm:$0xff]
      %v195 = vld [vmem:[%s1 + $0x8] sm:$0xff]
      %v196 = vld [vmem:[%s1 + $0x10] sm:$0xff]
      %v197 = vld [vmem:[%s1 + $0x18] sm:$0xff]
      %v198 = vld [vmem:[%s1 + $0x20] sm:$0xff]
      %v199 = vld [vmem:[%s1 + $0x28] sm:$0xff]
      %v200 = vld [vmem:[%s1 + $0x30] sm:$0xff]
      %v201 = vld [vmem:[%s1 + $0x38] sm:$0xff]
      %v202 = vld [vmem:[%s1 + $0x40] sm:$0xff]
      %v203 = vld [vmem:[%s1 + $0x48] sm:$0xff]
      %v204 = vld [vmem:[%s1 + $0x50] sm:$0xff]
      %v205 = vld [vmem:[%s1 + $0x58] sm:$0xff]
      %v206 = vld [vmem:[%s1 + $0x60] sm:$0xff]
      %v207 = vld [vmem:[%s1 + $0x68] sm:$0xff]
      %v208 = vld [vmem:[%s1 + $0x70] sm:$0xff]
      %v209 = vld [vmem:[%s1 + $0x78] sm:$0xff]
      %v210 = vld [vmem:[%s1 + $0x80] sm:$0x1]
      %v211 = vld [vmem:[%s1 + $0x88] sm:$0x1]
      %v212 = vld [vmem:[%s1 + $0x90] sm:$0x1]
      %v213 = vld [vmem:[%s1 + $0x98] sm:$0x1]
      %vm214 = vcmask 269312
      %v216 = vsel %vm214, %v193, 0
      %vm218 = vcmask 1040384
      %v220 = vsel %vm218, %v210, 0
      %v223 = vsel %vm218, %v211, 0
      %v226 = vsel %vm218, %v212, 0
      %v229 = vsel %vm218, %v213, 0
      %231 = vmatpush.msra.mxu0 0.0
      %232 = vmatpush.msra.mxu0 0.0
      %233 = vmatpush.msra.mxu0 0.0
      %234 = vmatpush.msra.mxu0 0.0
      %235 = vmatpush.msra.mxu0 0.0
      %236 = vmatpush.msra.mxu0 0.0
      %237 = vmatpush.msra.mxu0 0.0
      %238 = vmatpush.msra.mxu0 0.0
      %239 = vmatpush.msra.mxu0 0.0
      %240 = vmatpush.msra.mxu0 0.0
      %241 = vmatpush.msra.mxu0 0.0
      %242 = vmatpush.msra.mxu0 %v220
      %243 = vmatpush.msra.mxu0 %v206
      %244 = vmatpush.msra.mxu0 %v202
      %245 = vmatpush.msra.mxu0 %v198
      %246 = vmatpush.msra.mxu0 %v194
      %247 = vmatmul.f32.gmra.mxu0 %v216
      %v248 = vpop.f32.mrf.mxu0
      %v249 = vadd.f32 0.0, %v248
      %250 = vdwg.mxu0
      %251 = vmatpush.msra.mxu0 0.0
      %252 = vmatpush.msra.mxu0 0.0
      %253 = vmatpush.msra.mxu0 0.0
      %254 = vmatpush.msra.mxu0 0.0
      %255 = vmatpush.msra.mxu0 0.0
      %256 = vmatpush.msra.mxu0 0.0
      %257 = vmatpush.msra.mxu0 0.0
      %258 = vmatpush.msra.mxu0 0.0
      %259 = vmatpush.msra.mxu0 0.0
      %260 = vmatpush.msra.mxu0 0.0
      %261 = vmatpush.msra.mxu0 0.0
      %262 = vmatpush.msra.mxu0 %v223
      %263 = vmatpush.msra.mxu0 %v207
      %264 = vmatpush.msra.mxu0 %v203
      %265 = vmatpush.msra.mxu0 %v199
      %266 = vmatpush.msra.mxu0 %v195
      %267 = vmatmul.f32.gmra.mxu0 %v216
      %v268 = vpop.f32.mrf.mxu0
      %v269 = vadd.f32 0.0, %v268
      %270 = vdwg.mxu0
      %271 = vmatpush.msra.mxu0 0.0
      %272 = vmatpush.msra.mxu0 0.0
      %273 = vmatpush.msra.mxu0 0.0
      %274 = vmatpush.msra.mxu0 0.0
      %275 = vmatpush.msra.mxu0 0.0
      %276 = vmatpush.msra.mxu0 0.0
      %277 = vmatpush.msra.mxu0 0.0
      %278 = vmatpush.msra.mxu0 0.0
      %279 = vmatpush.msra.mxu0 0.0
      %280 = vmatpush.msra.mxu0 0.0
      %281 = vmatpush.msra.mxu0 0.0
      %282 = vmatpush.msra.mxu0 %v226
      %283 = vmatpush.msra.mxu0 %v208
      %284 = vmatpush.msra.mxu0 %v204
      %285 = vmatpush.msra.mxu0 %v200
      %286 = vmatpush.msra.mxu0 %v196
      %287 = vmatmul.f32.gmra.mxu0 %v216
      %v288 = vpop.f32.mrf.mxu0
      %v289 = vadd.f32 0.0, %v288
      %290 = vdwg.mxu0
      %291 = vmatpush.msra.mxu0 0.0
      %292 = vmatpush.msra.mxu0 0.0
      %293 = vmatpush.msra.mxu0 0.0
      %294 = vmatpush.msra.mxu0 0.0
      %295 = vmatpush.msra.mxu0 0.0
      %296 = vmatpush.msra.mxu0 0.0
      %297 = vmatpush.msra.mxu0 0.0
      %298 = vmatpush.msra.mxu0 0.0
      %299 = vmatpush.msra.mxu0 0.0
      %300 = vmatpush.msra.mxu0 0.0
      %301 = vmatpush.msra.mxu0 0.0
      %302 = vmatpush.msra.mxu0 %v229
      %303 = vmatpush.msra.mxu0 %v209
      %304 = vmatpush.msra.mxu0 %v205
      %305 = vmatpush.msra.mxu0 %v201
      %306 = vmatpush.msra.mxu0 %v197
      %307 = vmatmul.f32.gmra.mxu0 %v216
      %v308 = vpop.f32.mrf.mxu0
      %v309 = vadd.f32 0.0, %v308
      %310 = vdwg.mxu0
      %v311 = vmax.f32 %v309, 0.0
      %v312 = vld [vmem:[%s2] sm:$0xff]
      %v313 = vld [vmem:[%s2 + $0x8] sm:$0xff]
      %v314 = vld [vmem:[%s2 + $0x10] sm:$0xff]
      %v315 = vld [vmem:[%s2 + $0x18] sm:$0xff]
      %v316 = vld [vmem:[%s2 + $0x20] sm:$0xff]
      %v317 = vld [vmem:[%s2 + $0x28] sm:$0xff]
      %v318 = vld [vmem:[%s2 + $0x30] sm:$0xff]
      %v319 = vld [vmem:[%s2 + $0x38] sm:$0xff]
      %v320 = vld [vmem:[%s2 + $0x40] sm:$0xff]
      %v321 = vld [vmem:[%s2 + $0x48] sm:$0xff]
      %v322 = vld [vmem:[%s2 + $0x50] sm:$0xff]
      %v323 = vld [vmem:[%s2 + $0x58] sm:$0xff]
      %v324 = vld [vmem:[%s2 + $0x60] sm:$0xff]
      %v325 = vld [vmem:[%s2 + $0x68] sm:$0xff]
      %v326 = vld [vmem:[%s2 + $0x70] sm:$0xff]
      %v327 = vld [vmem:[%s2 + $0x78] sm:$0xff]
      %329 = vrot.lane.b32.xlu0 %v309, 30
      %v330 = vpop.permute.xlu0 %329
      %332 = vmatpush.msra.mxu0 %v327
      %333 = vmatpush.msra.mxu0 %v326
      %334 = vmatpush.msra.mxu0 %v325
      %335 = vmatpush.msra.mxu0 %v324
      %336 = vmatpush.msra.mxu0 %v323
      %337 = vmatpush.msra.mxu0 %v322
      %338 = vmatpush.msra.mxu0 %v321
      %339 = vmatpush.msra.mxu0 %v320
      %340 = vmatpush.msra.mxu0 %v319
      %341 = vmatpush.msra.mxu0 %v318
      %342 = vmatpush.msra.mxu0 %v317
      %343 = vmatpush.msra.mxu0 %v316
      %344 = vmatpush.msra.mxu0 %v315
      %345 = vmatpush.msra.mxu0 %v314
      %346 = vmatpush.msra.mxu0 %v313
      %347 = vmatpush.msra.mxu0 %v312
      %348 = vmatmul.f32.gmra.mxu0 %v311
      %v349 = vpop.f32.mrf.mxu0
      %v350 = vadd.f32 %v330, %v349
      %351 = vdwg.mxu0
      %353 = vrot.lane.b32.xlu0 %v350, 33
      %v354 = vpop.permute.xlu0 %353
      %v356 = vadd.f32 %v193, %v354
      %v357 = vand.u32 2147483647, %v249
      %v358 = vand.u32 2147483647, %v269
      %360 = vset.pattern.permute.xlu0 33
      %361 = vperm.xlu0 %360, %v356
      %v362 = vpop.permute.xlu0 %361
      %v364 = vmul.f32 %v362, %v357
      %365 = vset.pattern.permute.xlu0 34
      %366 = vperm.xlu0 %365, %v356
      %v367 = vpop.permute.xlu0 %366
      %v369 = vmul.f32 %v367, %v357
      %370 = vset.pattern.permute.xlu0 35
      %371 = vperm.xlu0 %370, %v356
      %v372 = vpop.permute.xlu0 %371
      %v374 = vmul.f32 %v372, %v358
      %375 = vset.pattern.permute.xlu0 36
      %376 = vperm.xlu0 %375, %v356
      %v377 = vpop.permute.xlu0 %376
      %v379 = vmul.f32 %v377, %v358
      %381 = vrot.lane.b32.xlu0 %v369, 64
      %v382 = vpop.permute.xlu0 %381
      %v384 = vadd.f32 %v364, %v382
      %386 = vrot.lane.b32.xlu0 %v379, 64
      %v387 = vpop.permute.xlu0 %386
      %v389 = vadd.f32 %v374, %v387
      %v390 = vadd.f32 %v384, %v389
      %v391 = vadd.f32 %v289, %v390
      %vm392 = vcmp.gt.f32.partialorder %v391, 0.0
      %v393 = vmin.f32 %v391, 0.0
      %v394 = vmul.f32 %v393, 1.442695
      %v395 = vpow.pop %v394
      %v396 = vsub.f32 %v395, 1.0
      %v397 = vsel %vm392, %v391, %v396
      %v398 = vand.u32 2147483647, %v289
      %400 = vrot.lane.b32.xlu0 %v398, 64
      %v401 = vpop.permute.xlu0 %400
      %v403 = vmul.f32 %v397, %v401
      %v404 = vld [vmem:[%s3] sm:$0xff]
      %v405 = vld [vmem:[%s3 + $0x8] sm:$0xff]
      %v406 = vld [vmem:[%s3 + $0x10] sm:$0xff]
      %v407 = vld [vmem:[%s3 + $0x18] sm:$0xff]
      %v408 = vld [vmem:[%s3 + $0x20] sm:$0xff]
      %v409 = vld [vmem:[%s3 + $0x28] sm:$0xff]
      %v410 = vld [vmem:[%s3 + $0x30] sm:$0xff]
      %v411 = vld [vmem:[%s3 + $0x38] sm:$0xff]
      %v412 = vld [vmem:[%s3 + $0x40] sm:$0xff]
      %v413 = vld [vmem:[%s3 + $0x48] sm:$0xff]
      %v414 = vld [vmem:[%s3 + $0x50] sm:$0xff]
      %v415 = vld [vmem:[%s3 + $0x58] sm:$0xff]
      %v416 = vld [vmem:[%s3 + $0x60] sm:$0xff]
      %v417 = vld [vmem:[%s3 + $0x68] sm:$0xff]
      %v418 = vld [vmem:[%s3 + $0x70] sm:$0xff]
      %v419 = vld [vmem:[%s3 + $0x78] sm:$0xff]
      %v420 = vld [vmem:[%s3 + $0x80] sm:$0xff]
      %v421 = vld [vmem:[%s3 + $0x88] sm:$0xff]
      %v422 = vld [vmem:[%s3 + $0x90] sm:$0xff]
      %v423 = vld [vmem:[%s3 + $0x98] sm:$0xff]
      %v424 = vld [vmem:[%s3 + $0xa0] sm:$0xff]
      %v425 = vld [vmem:[%s3 + $0xa8] sm:$0xff]
      %v426 = vld [vmem:[%s3 + $0xb0] sm:$0xff]
      %v427 = vld [vmem:[%s3 + $0xb8] sm:$0xff]
      %428 = vrot.lane.b32.xlu0 %v309, 32
      %v429 = vpop.permute.xlu0 %428
      %vm431 = vcmask 523264
      %v433 = vsel %vm431, %v403, 0
      %435 = vmatpush.msra.mxu0 %v419
      %436 = vmatpush.msra.mxu0 %v418
      %437 = vmatpush.msra.mxu0 %v417
      %438 = vmatpush.msra.mxu0 %v416
      %439 = vmatpush.msra.mxu0 %v415
      %440 = vmatpush.msra.mxu0 %v414
      %441 = vmatpush.msra.mxu0 %v413
      %442 = vmatpush.msra.mxu0 %v412
      %443 = vmatpush.msra.mxu0 %v411
      %444 = vmatpush.msra.mxu0 %v410
      %445 = vmatpush.msra.mxu0 %v409
      %446 = vmatpush.msra.mxu0 %v408
      %447 = vmatpush.msra.mxu0 %v407
      %448 = vmatpush.msra.mxu0 %v406
      %449 = vmatpush.msra.mxu0 %v405
      %450 = vmatpush.msra.mxu0 %v404
      %451 = vmatmul.f32.gmra.mxu0 %v311
      %v452 = vpop.f32.mrf.mxu0
      %v453 = vadd.f32 %v429, %v452
      %454 = vdwg.mxu0
      %455 = vmatpush.msra.mxu0 0.0
      %456 = vmatpush.msra.mxu0 0.0
      %457 = vmatpush.msra.mxu0 0.0
      %458 = vmatpush.msra.mxu0 0.0
      %459 = vmatpush.msra.mxu0 0.0
      %460 = vmatpush.msra.mxu0 0.0
      %461 = vmatpush.msra.mxu0 0.0
      %462 = vmatpush.msra.mxu0 0.0
      %463 = vmatpush.msra.mxu0 %v427
      %464 = vmatpush.msra.mxu0 %v426
      %465 = vmatpush.msra.mxu0 %v425
      %466 = vmatpush.msra.mxu0 %v424
      %467 = vmatpush.msra.mxu0 %v423
      %468 = vmatpush.msra.mxu0 %v422
      %469 = vmatpush.msra.mxu0 %v421
      %470 = vmatpush.msra.mxu0 %v420
      %471 = vmatmul.f32.gmra.mxu0 %v433
      %v472 = vpop.f32.mrf.mxu0
      %v473 = vadd.f32 %v453, %v472
      %474 = vdwg.mxu0
      %vm475 = vcmask 48128
      %476 = vst.msk [vmem:[%s192] sm:$0xff] %vm475, %v473
      %p477 = scmp.lt.s32.totalorder %s15, 1
      %s478 = scalar_select %p477, %s15, 1
      %s479 = smul.addr %s478, 8
      %s480 = scalar_lea.vmem %s4, %s479
      // Predicated region
      $region37: #{tpu_custom_call.1} parent=35 // pred_check
        %p481 = pneg %p122
      $region38: #{tpu_custom_call.1} parent=35 // pred_check_branch
        %483 = sbr.rel (%p481) target = $region40
      $region39: #{tpu_custom_call.1} parent=35 // pred_region
        _
      $region40: #{tpu_custom_call.1} parent=35 // pred_fallthru
        _
    $region36: #{tpu_custom_call.1} parent=5 // pred_fallthru
      _
    %p484 = scmp.le.s32.totalorder 2, %s10
    // Predicated region
    $region41: #{tpu_custom_call.1} parent=5 // pred_check
      %p485 = pneg %p484
    $region42: #{tpu_custom_call.1} parent=5 // pred_check_branch
      %487 = sbr.rel (%p485) target = $region44
    $region43: #{tpu_custom_call.1} parent=5 // pred_region
      %s488 = ssub.s32 %s10, 2
      // Predicated region
      $region45: #{tpu_custom_call.1} parent=43 // pred_check
        %p489 = pneg %p128
      $region46: #{tpu_custom_call.1} parent=43 // pred_check_branch
        %491 = sbr.rel (%p489) target = $region48
      $region47: #{tpu_custom_call.1} parent=43 // pred_region
        %p492 = scmp.lt.s32.totalorder %s16, 1
        %s493 = scalar_select %p492, %s16, 1
        %s494 = smul.addr %s493, 8
        %s495 = scalar_lea.vmem %s4, %s494
      $region48: #{tpu_custom_call.1} parent=43 // pred_fallthru
        _
    $region44: #{tpu_custom_call.1} parent=5 // pred_fallthru
      _
  $region6: #{tpu_custom_call.1} parent=0 // loop_footer
    %s14 = sadd.s32 1, %s10
  $region7: #{tpu_custom_call.1} parent=0 // loop_footer_branch
    %9 = sbr.rel target = $region3
  $region8: #{tpu_custom_call.1} parent=0 // loop_exit
    _

</llo_original>
